<compile_context>
chip_gen: v6e
topology: v6e:2x2x1
jax: 0.10.0
libtpu: 0.0.40
codegen_flags: <defaults>
</compile_context>

<pallas_src>
import jax
import jax.numpy as jnp
from jax.experimental import pallas as pl
from jax.experimental.pallas import tpu as pltpu

_MAX_TM = 4096            # soft cap on the row tile; >=512 rows already hits ~85% of roofline


def _round_up(a: int, b: int) -> int:
    return (a + b - 1) // b * b


def _largest_aligned_divisor(n: int, cap: int):
    """Largest d with d % 8 == 0, d | n, d <= cap (None if none exists)."""
    best = None
    for d in range(8, min(n, cap) + 1, 8):
        if n % d == 0:
            best = d
    return best


def _expand_target(target: jax.Array, n_rep: int) -> jax.Array:
    """Mirrors the PyTorch repeat/cat logic (requires N_t <= N_rep)."""
    n = target.shape[0]
    if n == n_rep:
        return target
    ratio = n_rep // n
    out = jnp.tile(target, (ratio, 1))
    extra = n_rep - ratio * n
    if extra:
        out = jnp.concatenate([out, target[:extra]], axis=0)
    return out


def _default_vmem_limit() -> int:
    try:
        cap = int(getattr(pltpu.get_tpu_info(), "vmem_capacity_bytes",
                          64 * 1024 * 1024))
    except Exception:
        cap = 64 * 1024 * 1024                 # safe on every generation
    # ~96 MiB on v5e/v6e (128 MiB cores), ~48 MiB on v7x (64 MiB cores)
    return int(0.75 * cap)


def _make_kernel(*, mode: str, n_t: int, tm: int, targets_sum_to_one: bool):
    def kernel(x_ref, t_ref, loss_ref):
        x = x_ref[...].astype(jnp.float32)                       # (tm, C)

        if mode == "resident":
            if tm == n_t:
                t = t_ref[...].astype(jnp.float32)
            elif tm % n_t == 0:
                # expanded[r] = target[r % n_t]  ->  tile the resident target in VMEM
                t = jnp.tile(t_ref[...], (tm // n_t, 1)).astype(jnp.float32)
            else:                                                # tm | n_t
                i = pl.program_id(0)
                start = pl.multiple_of((i % (n_t // tm)) * tm, tm)
                t = t_ref[pl.ds(start, tm), :].astype(jnp.float32)
        else:
            t = t_ref[...].astype(jnp.float32)                   # (tm, C)

        m = jnp.max(x, axis=-1, keepdims=True)                              # (tm, 1)
        lse = jnp.log(jnp.sum(jnp.exp(x - m), axis=-1, keepdims=True))      # (tm, 1)
        tx = jnp.sum(t * x, axis=-1, keepdims=True)                         # (tm, 1)
        # -sum(t*log_softmax(x)) == (m+lse)*sum(t) - sum(t*x)
        if targets_sum_to_one:
            loss_ref[...] = (m + lse) - tx
        else:
            t_sum = jnp.sum(t, axis=-1, keepdims=True)                      # (tm, 1)
            loss_ref[...] = (m + lse) * t_sum - tx

    return kernel


def soft_target_cross_entropy(x: jax.Array, target: jax.Array, *,
                              tm: int | None = None,
                              vmem_limit_bytes: int | None = None,
                              targets_sum_to_one: bool = False) -> jax.Array:
    """x: (N_rep, C) logits, target: (N_t, C) soft labels. Returns scalar f32 loss."""
    n_rep, c = x.shape
    n_t, c_t = target.shape
    if c_t != c:
        raise ValueError("x and target must share the class dimension")
    if n_t > n_rep:
        # The PyTorch module would build an empty target and error here as well.
        raise ValueError("target batch larger than logits batch is unsupported")

    if vmem_limit_bytes is None:
        vmem_limit_bytes = _default_vmem_limit()
    input_budget = int(vmem_limit_bytes * 0.8)        # headroom for output bufs / scratch

    x_bytes = jnp.dtype(x.dtype).itemsize
    t_bytes = jnp.dtype(target.dtype).itemsize
    per_row_stream = 2 * c * (x_bytes + t_bytes)      # double-buffered x + target tiles
    per_row_x_only = 2 * c * x_bytes                  # double-buffered x tile only
    per_row_tmp = 4 * c * 4                           # in-kernel f32 temporaries headroom
    resident_fixed = 2 * n_t * c * t_bytes            # resident target (worst-case 2 bufs)

    # ---- how the target reaches the kernel -------------------------------
    #   stream_full : N_t == N_rep           -> stream matching (tm, C) tiles
    #   resident    : whole (N_t, C) target lives in VMEM, sliced/tiled in-kernel
    #   cyclic      : stream target tiles with a cycling index_map (tm | N_t)
    #   materialize : expand target to N_rep rows once in HBM (rare fallback)
    if n_t == n_rep:
        mode = "stream_full"
    elif n_t % 8 == 0 and resident_fixed + 8 * (per_row_x_only + per_row_tmp) <= input_budget:
        mode = "resident"
    elif n_t % 8 == 0:
        mode = "cyclic"
    else:
        mode = "materialize"

    def _stream_cap():
        cap = input_budget // (per_row_stream + per_row_tmp)
        return min(max(8, (cap // 8) * 8), _MAX_TM)

    def _resident_cap():
        cap = (input_budget - resident_fixed) // (per_row_x_only + per_row_tmp)
        return min(max(8, (cap // 8) * 8), _MAX_TM)

    if mode != "resident" and input_budget // (per_row_stream + per_row_tmp) < 8:
        # TODO(synk): class-axis (online-LSE) split for vocab-scale C.
        raise ValueError("class dim too large for a full-C row tile in VMEM")

    # >= 2 row tiles for large batches so v7x's two TensorCores both get work.
    row_cap = _round_up(pl.cdiv(n_rep, 2), 8) if n_rep >= 512 else _round_up(n_rep, 8)

    # ---- row-tile size ----------------------------------------------------
    if tm is None:
        if mode == "resident":
            cap = _resident_cap()
            if n_t <= cap:
                tm = max(n_t, (min(cap, row_cap) // n_t) * n_t)   # multiple of N_t
            else:
                tm = _largest_aligned_divisor(n_t, cap) or 8      # divisor of N_t
        elif mode == "cyclic":
            tm = _largest_aligned_divisor(n_t, _stream_cap()) or 8
        else:
            tm = min(_stream_cap(), row_cap)
    else:
        tm = max(8, (tm // 8) * 8)
        cap = _resident_cap() if mode == "resident" else _stream_cap()
        tm = min(tm, cap, _round_up(n_rep, 8))
        if mode == "resident" and not (n_t % tm == 0 or tm % n_t == 0):
            mode = "materialize"
            tm = min(tm, _stream_cap())
        elif mode == "cyclic" and n_t % tm != 0:
            mode = "materialize"
            tm = min(tm, _stream_cap())

    num_tiles = pl.cdiv(n_rep, tm)
    n_padded = num_tiles * tm          # ragged-tail rows are garbage and sliced off below

    # ---- target array + BlockSpec per mode --------------------------------
    if mode == "resident":
        t_arr = target
        t_spec = pl.BlockSpec((n_t, c), lambda i: (0, 0))   # constant index -> fetched once
    elif mode == "cyclic":
        t_arr = target
        n_t_blocks = n_t // tm
        t_spec = pl.BlockSpec((tm, c), lambda i: (i % n_t_blocks, 0))
    elif mode == "stream_full":
        t_arr = target
        t_spec = pl.BlockSpec((tm, c), lambda i: (i, 0))
    else:  # materialize
        t_arr = _expand_target(target, n_rep)
        t_spec = pl.BlockSpec((tm, c), lambda i: (i, 0))

    kernel = _make_kernel(mode=mode, n_t=n_t, tm=tm,
                          targets_sum_to_one=targets_sum_to_one)

    per_row = pl.pallas_call(
        kernel,
        out_shape=jax.ShapeDtypeStruct((n_padded, 1), jnp.float32),
        grid_spec=pltpu.PrefetchScalarGridSpec(
            num_scalar_prefetch=0,
            grid=(num_tiles,),
            in_specs=[pl.BlockSpec((tm, c), lambda i: (i, 0)), t_spec],
            out_specs=pl.BlockSpec((tm, 1), lambda i: (i, 0)),
        ),
        compiler_params=pltpu.CompilerParams(
            dimension_semantics=("parallel",),      # independent tiles -> megacore friendly
            vmem_limit_bytes=vmem_limit_bytes,
        ),
    )(x, t_arr)

    # Tiny epilogue in plain JAX: drop ragged-tail rows, mean over the batch.
    return jnp.sum(per_row[:n_rep, 0]) / jnp.float32(n_rep)


def _reference(x, target):
    n_rep = x.shape[0]
    t = _expand_target(target, n_rep).astype(jnp.float32)
    logp = jax.nn.log_softmax(x.astype(jnp.float32), axis=-1)
    return jnp.mean(jnp.sum(-t * logp, axis=-1))


if __name__ == "__main__":
    key = jax.random.PRNGKey(0)
    k1, k2, k3, k4, k5, k6 = jax.random.split(key, 6)

    # A: N_t == N_rep (stream_full path), ragged tail (20 % 8 != 0), C = 96.
    xa = jax.random.normal(k1, (20, 96), dtype=jnp.float32)
    ta = jax.nn.softmax(jax.random.normal(k2, (20, 96), dtype=jnp.float32), axis=-1)
    la = jax.block_until_ready(soft_target_cross_entropy(xa, ta))
    ra = _reference(xa, ta)
    assert jnp.allclose(la, ra, rtol=1e-5, atol=1e-5), (la, ra)

    # B: VMEM-resident target, in-kernel pl.ds slice (tm=8 | N_t=16), sum-to-one fast path.
    xb = jax.random.normal(k3, (20, 128), dtype=jnp.float32)
    tb = jax.nn.softmax(jax.random.normal(k4, (16, 128), dtype=jnp.float32), axis=-1)
    lb = jax.block_until_ready(
        soft_target_cross_entropy(xb, tb, tm=8, targets_sum_to_one=True))
    rb = _reference(xb, tb)
    assert jnp.allclose(lb, rb, rtol=1e-5, atol=1e-5), (lb, rb)

    # C: misaligned small target (N_t=6) -> materialized-repeat fallback.
    xc = jax.random.normal(k5, (16, 64), dtype=jnp.float32)
    tc = jax.nn.softmax(jax.random.normal(k6, (6, 64), dtype=jnp.float32), axis=-1)
    lc = jax.block_until_ready(soft_target_cross_entropy(xc, tc))
    rc = _reference(xc, tc)
    assert jnp.allclose(lc, rc, rtol=1e-5, atol=1e-5), (lc, rc)

    # D: bf16 end-to-end (halves HBM traffic), resident target expanded via in-kernel jnp.tile.
    xd = jax.random.normal(k1, (48, 128), dtype=jnp.bfloat16)
    td = jax.nn.softmax(jax.random.normal(k2, (16, 128), dtype=jnp.float32),
                        axis=-1).astype(jnp.bfloat16)
    ld = jax.block_until_ready(soft_target_cross_entropy(xd, td))
    rd = _reference(xd, td)
    assert jnp.allclose(ld, rd, rtol=1e-4, atol=1e-4), (ld, rd)

    print("KERNEL_OK")
</pallas_src>

<mosaic_0001>
module attributes {stable_mosaic.version = 11 : i64} {
  func.func @kernel(%arg0: i32, %arg1: memref<24x96xf32, #tpu.memory_space<vmem>>, %arg2: memref<24x96xf32, #tpu.memory_space<vmem>>, %arg3: memref<24x1xf32, #tpu.memory_space<vmem>>) attributes {dimension_semantics = [#tpu.dimension_semantics<parallel>], iteration_bounds = array<i64: 1>, scalar_prefetch = 0 : i64, scratch_operands = 0 : i64, tpu.core_type = #tpu.core_type<tc>, window_params = [{transform_indices = @transform_0, window_bounds = array<i64: 24, 96>}, {transform_indices = @transform_1, window_bounds = array<i64: 24, 96>}, {transform_indices = @transform_2, window_bounds = array<i64: 24, 1>}]} {
    %c0 = arith.constant 0 : index
    %c0_0 = arith.constant 0 : index
    %0 = vector.load %arg1[%c0, %c0_0] : memref<24x96xf32, #tpu.memory_space<vmem>>, vector<24x96xf32>
    %c0_1 = arith.constant 0 : index
    %c0_2 = arith.constant 0 : index
    %1 = vector.load %arg2[%c0_1, %c0_2] : memref<24x96xf32, #tpu.memory_space<vmem>>, vector<24x96xf32>
    %cst = arith.constant dense<0xFF800000> : vector<24xf32>
    %2 = vector.multi_reduction <maximumf>, %0, %cst [1] : vector<24x96xf32> to vector<24xf32>
    %3 = vector.shape_cast %2 : vector<24xf32> to vector<24x1xf32>
    %4 = vector.broadcast %3 : vector<24x1xf32> to vector<24x96xf32>
    %5 = arith.subf %0, %4 : vector<24x96xf32>
    %6 = math.exp %5 : vector<24x96xf32>
    %cst_3 = arith.constant dense<0.000000e+00> : vector<24xf32>
    %7 = vector.multi_reduction <add>, %6, %cst_3 [1] : vector<24x96xf32> to vector<24xf32>
    %8 = vector.shape_cast %7 : vector<24xf32> to vector<24x1xf32>
    %9 = math.log %8 : vector<24x1xf32>
    %10 = arith.mulf %1, %0 : vector<24x96xf32>
    %cst_4 = arith.constant dense<0.000000e+00> : vector<24xf32>
    %11 = vector.multi_reduction <add>, %10, %cst_4 [1] : vector<24x96xf32> to vector<24xf32>
    %12 = vector.shape_cast %11 : vector<24xf32> to vector<24x1xf32>
    %cst_5 = arith.constant dense<0.000000e+00> : vector<24xf32>
    %13 = vector.multi_reduction <add>, %1, %cst_5 [1] : vector<24x96xf32> to vector<24xf32>
    %14 = vector.shape_cast %13 : vector<24xf32> to vector<24x1xf32>
    %15 = arith.addf %3, %9 : vector<24x1xf32>
    %16 = arith.mulf %15, %14 : vector<24x1xf32>
    %17 = arith.subf %16, %12 : vector<24x1xf32>
    %c0_6 = arith.constant 0 : index
    %c0_7 = arith.constant 0 : index
    %18 = vector.load %arg3[%c0_6, %c0_7] : memref<24x1xf32, #tpu.memory_space<vmem>>, vector<24x1xf32>
    tpu.vector_store %arg3[%c0_6, %c0_7], %17 {strides = array<i32>} : memref<24x1xf32, #tpu.memory_space<vmem>>, vector<24x1xf32>,
    return
  }
  func.func @transform_0(%arg0: i32) -> (i32, i32) {
    %c0_i32 = arith.constant 0 : i32
    %c0_i32_0 = arith.constant 0 : i32
    return %arg0, %c0_i32 : i32, i32
  }
  func.func @transform_1(%arg0: i32) -> (i32, i32) {
    %c0_i32 = arith.constant 0 : i32
    %c0_i32_0 = arith.constant 0 : i32
    return %arg0, %c0_i32 : i32, i32
  }
  func.func @transform_2(%arg0: i32) -> (i32, i32) {
    %c0_i32 = arith.constant 0 : i32
    %c0_i32_0 = arith.constant 0 : i32
    return %arg0, %c0_i32 : i32, i32
  }
}

</mosaic_0001>

<llo_original>
// kernel: tpu_custom_call.1
$region0: #{tpu_custom_call.1}
  #allocation0 [shape = 'u32[]', space=smem, size = 0x4, offset = 0x4, fixed_abs, tag = 'smem constant byte address 0x4 - core index']
  #allocation1 [shape = 'u32[144,128]{1,0:T(1,128)}', space=vmem, size = 0x12000, scoped, tag = 'internal scratch']
  %s0 = inlined_call_operand.hbm [shape: f32[20,96], index: 0, kind: input, shape index: {}]
  %s1 = inlined_call_operand.hbm [shape: f32[20,96], index: 1, kind: input, shape index: {}]
  %s2 = inlined_call_operand.vmem [shape: f32[24,1], index: 2, kind: output, shape index: {}]
  %s3 = sld [smem:[#allocation0]]
  $region26: #{tpu_custom_call.1} parent=0
    _
  %s5 = ssub.s32 1, %s3
  %s6 = scalar_select 0, %s5, %s3
  $region1: #{tpu_custom_call.1} parent=0
    #allocation2 [shape = 'u8[12288]{0}', space=vmem, size = 0x3000, scoped, tag = 'input window, operand 0, single buffered']
    #allocation3 [shape = 's32[1]{0}', space=sflag, size = 0x4, scoped, tag = 'scoped memory for tpu_custom_call.1']
    #allocation4 [shape = 'u8[12288]{0}', space=vmem, size = 0x3000, scoped, tag = 'input window, operand 1, single buffered']
    #allocation5 [shape = 's32[1]{0}', space=sflag, size = 0x4, scoped, tag = 'scoped memory for tpu_custom_call.1']
    %7 = vsyncpa [#allocation3], 0
    %8 = vsyncpa [#allocation5], 0
    // Predicated region
    $region2: #{tpu_custom_call.1} parent=1 // pred_check
      _
    $region3: #{tpu_custom_call.1} parent=1 // pred_check_branch
      %10 = sbr.rel (0) target = $region5
    $region4: #{tpu_custom_call.1} parent=1 // pred_region
      %s12 = ssub.s32 384, 384
      %13 = vsyncadd [#allocation3], %s12
      %s14 = sshll.u32 [#allocation2], 4
      %s15 = int_to_ptr.vmem [resolvable:$true] %s14
      %20 = dma.hbm_to_vmem [thread:$0]  %s0, 384, %s15, [#allocation3], 128, 128, 8
    $region5: #{tpu_custom_call.1} parent=1 // pred_fallthru
      _
    // Predicated region
    $region6: #{tpu_custom_call.1} parent=1 // pred_check
      _
    $region7: #{tpu_custom_call.1} parent=1 // pred_check_branch
      %22 = sbr.rel (0) target = $region9
    $region8: #{tpu_custom_call.1} parent=1 // pred_region
      %s24 = ssub.s32 384, 384
      %25 = vsyncadd [#allocation5], %s24
      %s26 = sshll.u32 [#allocation4], 4
      %s27 = int_to_ptr.vmem [resolvable:$true] %s26
      %32 = dma.hbm_to_vmem [thread:$0]  %s1, 384, %s27, [#allocation5], 128, 128, 8
    $region9: #{tpu_custom_call.1} parent=1 // pred_fallthru
      _
    // Predicated region
    $region10: #{tpu_custom_call.1} parent=1 // pred_check
      _
    $region11: #{tpu_custom_call.1} parent=1 // pred_check_branch
      %34 = sbr.rel (0) target = $region13
    $region12: #{tpu_custom_call.1} parent=1 // pred_region
      %35 = dma.done [#allocation3], 384
    $region13: #{tpu_custom_call.1} parent=1 // pred_fallthru
      _
    // Predicated region
    $region14: #{tpu_custom_call.1} parent=1 // pred_check
      _
    $region15: #{tpu_custom_call.1} parent=1 // pred_check_branch
      %37 = sbr.rel (0) target = $region17
    $region16: #{tpu_custom_call.1} parent=1 // pred_region
      %38 = dma.done [#allocation5], 384
    $region17: #{tpu_custom_call.1} parent=1 // pred_fallthru
      _
    %v39 = vld [vmem:[#allocation2] sm:$0xff]
    %v40 = vld [vmem:[#allocation2 + $0x8] sm:$0xff]
    %v41 = vld [vmem:[#allocation2 + $0x10] sm:$0xff]
    %v42 = vld [vmem:[#allocation4] sm:$0xff]
    %v43 = vld [vmem:[#allocation4 + $0x8] sm:$0xff]
    %v44 = vld [vmem:[#allocation4 + $0x10] sm:$0xff]
    %vm45 = vcmask 785408
    %v46 = vsel %vm45, %v39, -inf
    %47 = vmax.xlane.f32.xlu0 %v46
    %v48 = vpop.xlane.xlu0 %47
    %v49 = vsel %vm45, %v40, -inf
    %50 = vmax.xlane.f32.xlu0 %v49
    %v51 = vpop.xlane.xlu0 %50
    %v52 = vsel %vm45, %v41, -inf
    %53 = vmax.xlane.f32.xlu0 %v52
    %v54 = vpop.xlane.xlu0 %53
    %v55 = vsub.f32 %v39, %v48
    %v56 = vsub.f32 %v40, %v51
    %v57 = vsub.f32 %v41, %v54
    %v58 = vmul.f32 %v55, 1.442695
    %v59 = vpow.pop %v58
    %v60 = vmul.f32 %v56, 1.442695
    %v61 = vpow.pop %v60
    %v62 = vmul.f32 %v57, 1.442695
    %v63 = vpow.pop %v62
    %v64 = vsel %vm45, %v59, 0.0
    %65 = vadd.xlane.f32.xlu0 %v64
    %v66 = vpop.xlane.xlu0 %65
    %v67 = vsel %vm45, %v61, 0.0
    %68 = vadd.xlane.f32.xlu0 %v67
    %v69 = vpop.xlane.xlu0 %68
    %v70 = vsel %vm45, %v63, 0.0
    %71 = vadd.xlane.f32.xlu0 %v70
    %v72 = vpop.xlane.xlu0 %71
    %v73 = vlog2.pop %v66
    %v74 = vmul.f32 %v73, 0.6931472
    %v75 = vlog2.pop %v69
    %v76 = vmul.f32 %v75, 0.6931472
    %v77 = vlog2.pop %v72
    %v78 = vmul.f32 %v77, 0.6931472
    %v79 = vmul.f32 %v42, %v39
    %v80 = vmul.f32 %v43, %v40
    %v81 = vmul.f32 %v44, %v41
    %v82 = vsel %vm45, %v79, 0.0
    %83 = vadd.xlane.f32.xlu0 %v82
    %v84 = vpop.xlane.xlu0 %83
    %v85 = vsel %vm45, %v80, 0.0
    %86 = vadd.xlane.f32.xlu0 %v85
    %v87 = vpop.xlane.xlu0 %86
    %v88 = vsel %vm45, %v81, 0.0
    %89 = vadd.xlane.f32.xlu0 %v88
    %v90 = vpop.xlane.xlu0 %89
    %v91 = vsel %vm45, %v42, 0.0
    %92 = vadd.xlane.f32.xlu0 %v91
    %v93 = vpop.xlane.xlu0 %92
    %v94 = vsel %vm45, %v43, 0.0
    %95 = vadd.xlane.f32.xlu0 %v94
    %v96 = vpop.xlane.xlu0 %95
    %v97 = vsel %vm45, %v44, 0.0
    %98 = vadd.xlane.f32.xlu0 %v97
    %v99 = vpop.xlane.xlu0 %98
    %v100 = vadd.f32 %v48, %v74
    %v101 = vadd.f32 %v51, %v76
    %v102 = vadd.f32 %v54, %v78
    %v103 = vmul.f32 %v100, %v93
    %v104 = vmul.f32 %v101, %v96
    %v105 = vmul.f32 %v102, %v99
    %v106 = vsub.f32 %v103, %v84
    %v107 = vsub.f32 %v104, %v87
    %v108 = vsub.f32 %v105, %v90
    %vm109 = vcmask 7168
    %110 = vst.msk [vmem:[%s2] sm:$0xff] %vm109, %v106
    %111 = vst.msk [vmem:[%s2 + $0x8] sm:$0xff] %vm109, %v107
    %112 = vst.msk [vmem:[%s2 + $0x10] sm:$0xff] %vm109, %v108
    // Predicated region
    $region18: #{tpu_custom_call.1} parent=1 // pred_check
      _
    $region19: #{tpu_custom_call.1} parent=1 // pred_check_branch
      %114 = sbr.rel (0) target = $region21
    $region20: #{tpu_custom_call.1} parent=1 // pred_region
      _
    $region21: #{tpu_custom_call.1} parent=1 // pred_fallthru
      _
    // Predicated region
    $region22: #{tpu_custom_call.1} parent=1 // pred_check
      _
    $region23: #{tpu_custom_call.1} parent=1 // pred_check_branch
      %116 = sbr.rel (0) target = $region25
    $region24: #{tpu_custom_call.1} parent=1 // pred_region
      _
    $region25: #{tpu_custom_call.1} parent=1 // pred_fallthru
      _
    %117 = vsyncpa [#allocation3], 1
    %118 = vsyncpa [#allocation5], 1

</llo_original>
